<compile_context>
chip_gen: v7x
topology: tpu7x:2x2x1
jax: 0.10.0
libtpu: 0.0.40
codegen_flags: <defaults>
</compile_context>

<pallas_src>
import functools

import jax
import jax.numpy as jnp
from jax.experimental import pallas as pl
from jax.experimental.pallas import tpu as pltpu


_TARGET_BLOCK_BYTES = 2 * 1024 * 1024      # ~2 MiB per pipelined block
_VMEM_LIMIT_BYTES = 32 * 1024 * 1024       # safe scoped-VMEM budget on v5e/v6e/v7x
_LANES = 128


# ---------------------------------------------------------------------------
# channels_last: rows on sublanes, (folded) channels on lanes.
# ---------------------------------------------------------------------------
def _ln_rows_kernel(x_ref, w_ref, b_ref, o_ref, *, eps, groups, c):
    """x_ref/o_ref: (tr, groups*c); w_ref/b_ref: (1, groups*c), f32.

    Each c-wide lane segment of a row is an independent LayerNorm instance
    (groups == 1 is the plain row-wise case). When groups > 1 the segments are
    lane-tile aligned (c divides 128), so the lane slices stay cheap.
    """
    x = x_ref[...].astype(jnp.float32)
    w = w_ref[...]
    b = b_ref[...]

    def _norm(seg):
        mean = jnp.mean(seg, axis=-1, keepdims=True)
        cen = seg - mean
        var = jnp.mean(cen * cen, axis=-1, keepdims=True)  # biased var == F.layer_norm
        return cen * jax.lax.rsqrt(var + eps)

    if groups == 1:
        y = _norm(x)
    else:
        # Segmented (per-group) normalization; lane slices + lane concat only.
        y = jnp.concatenate(
            [_norm(x[:, g * c:(g + 1) * c]) for g in range(groups)], axis=-1)

    o_ref[...] = (y * w + b).astype(o_ref.dtype)


def _rows_per_block(num_rows, row_bytes):
    tr = (_TARGET_BLOCK_BYTES // max(row_bytes, 1)) // 8 * 8
    tr = max(tr, 8)
    return num_rows if tr >= num_rows else tr


def _layernorm_channels_last(x, weight, bias, eps):
    C = x.shape[-1]
    R = x.size // C

    # Lane folding: pack G = 128 // C rows into one 128-wide lane-dense row.
    groups = 1
    if C < _LANES and _LANES % C == 0:
        g = _LANES // C
        if g <= 16 and R % g == 0:
            groups = g
    Rl, Cl = R // groups, C * groups

    x2d = x.reshape(Rl, Cl)                              # row-major, zero-cost view
    w2d = jnp.tile(weight.reshape(1, C).astype(jnp.float32), (1, groups))
    b2d = jnp.tile(bias.reshape(1, C).astype(jnp.float32), (1, groups))

    tr = _rows_per_block(Rl, Cl * 4)
    grid = (pl.cdiv(Rl, tr),)                            # ragged last block is fine

    out = pl.pallas_call(
        functools.partial(_ln_rows_kernel, eps=eps, groups=groups, c=C),
        out_shape=jax.ShapeDtypeStruct((Rl, Cl), x.dtype),
        grid_spec=pltpu.PrefetchScalarGridSpec(
            num_scalar_prefetch=0,
            grid=grid,
            in_specs=[
                pl.BlockSpec((tr, Cl), lambda i: (i, 0)),
                pl.BlockSpec((1, Cl), lambda i: (0, 0)),
                pl.BlockSpec((1, Cl), lambda i: (0, 0)),
            ],
            out_specs=pl.BlockSpec((tr, Cl), lambda i: (i, 0)),
        ),
        compiler_params=pltpu.CompilerParams(
            dimension_semantics=("parallel",),
            vmem_limit_bytes=_VMEM_LIMIT_BYTES,
        ),
    )(x2d, w2d, b2d)
    return out.reshape(x.shape)


# ---------------------------------------------------------------------------
# channels_first (NCHW): channels on sublanes, spatial on lanes. No transpose.
# ---------------------------------------------------------------------------
def _ln_chan_kernel(x_ref, w_ref, b_ref, o_ref, *, eps):
    """x_ref/o_ref: (bn, C, t); w_ref/b_ref: (C, 1), f32. Reduce over channels."""
    x = x_ref[...].astype(jnp.float32)                   # (bn, C, t)
    mean = jnp.mean(x, axis=1, keepdims=True)            # (bn, 1, t)
    cen = x - mean
    var = jnp.mean(cen * cen, axis=1, keepdims=True)
    y = cen * jax.lax.rsqrt(var + eps)
    w = w_ref[...]                                       # (C, 1) -> broadcast
    b = b_ref[...]
    o_ref[...] = (y * w + b).astype(o_ref.dtype)


def _lanes_per_block(hw, col_bytes):
    t = (_TARGET_BLOCK_BYTES // max(col_bytes, 1)) // _LANES * _LANES
    t = max(t, _LANES)
    return hw if t >= hw else t


def _layernorm_channels_first(x, weight, bias, eps):
    N, C = x.shape[0], x.shape[1]
    HW = 1
    for d in x.shape[2:]:
        HW *= d
    x3 = x.reshape(N, C, HW)                             # merges minor dims only
    wc = weight.reshape(C, 1).astype(jnp.float32)
    bc = bias.reshape(C, 1).astype(jnp.float32)

    # Lane tile along spatial; batch samples per block when feature maps are small.
    t = _lanes_per_block(HW, C * 4)
    bn = max(1, _TARGET_BLOCK_BYTES // (C * t * 4))
    bn = min(bn, N)
    grid = (pl.cdiv(N, bn), pl.cdiv(HW, t))              # ragged edges handled by Pallas

    out = pl.pallas_call(
        functools.partial(_ln_chan_kernel, eps=eps),
        out_shape=jax.ShapeDtypeStruct((N, C, HW), x.dtype),
        grid_spec=pltpu.PrefetchScalarGridSpec(
            num_scalar_prefetch=0,
            grid=grid,
            in_specs=[
                pl.BlockSpec((bn, C, t), lambda n, j: (n, 0, j)),
                pl.BlockSpec((C, 1), lambda n, j: (0, 0)),
                pl.BlockSpec((C, 1), lambda n, j: (0, 0)),
            ],
            out_specs=pl.BlockSpec((bn, C, t), lambda n, j: (n, 0, j)),
        ),
        compiler_params=pltpu.CompilerParams(
            dimension_semantics=("parallel", "parallel"),
            vmem_limit_bytes=_VMEM_LIMIT_BYTES,
        ),
    )(x3, wc, bc)
    return out.reshape(x.shape)


# ---------------------------------------------------------------------------
# Public API (mirrors the PyTorch module's forward)
# ---------------------------------------------------------------------------
def layer_norm(x, weight, bias, eps=1e-6, data_format="channels_last"):
    if data_format == "channels_last":
        assert weight.shape == (x.shape[-1],) and bias.shape == (x.shape[-1],)
        return _layernorm_channels_last(x, weight, bias, eps)
    elif data_format == "channels_first":
        assert weight.shape == (x.shape[1],) and bias.shape == (x.shape[1],)
        return _layernorm_channels_first(x, weight, bias, eps)
    raise NotImplementedError(data_format)


# ---------------------------------------------------------------------------
# Pure-JAX reference for correctness checks
# ---------------------------------------------------------------------------
def _ref_layer_norm(x, weight, bias, eps, data_format):
    if data_format == "channels_last":
        mean = jnp.mean(x, axis=-1, keepdims=True)
        var = jnp.mean((x - mean) ** 2, axis=-1, keepdims=True)
        return (x - mean) / jnp.sqrt(var + eps) * weight + bias
    else:
        u = jnp.mean(x, axis=1, keepdims=True)
        s = jnp.mean((x - u) ** 2, axis=1, keepdims=True)
        xn = (x - u) / jnp.sqrt(s + eps)
        return weight[None, :, None, None] * xn + bias[None, :, None, None]


if __name__ == "__main__":
    key = jax.random.PRNGKey(0)
    k1, k2, k3, k4, k5, k6, k7, k8, k9 = jax.random.split(key, 9)

    eps = 1e-6
    C = 32
    # Module __init__ uses ones/zeros; random values exercise the scale/shift path.
    weight = jax.random.normal(k3, (C,), dtype=jnp.float32)
    bias = jax.random.normal(k4, (C,), dtype=jnp.float32)

    # channels_last (..., C): lane-folded path (C=32 -> 4 groups of 32 lanes).
    x_cl = jax.random.normal(k1, (2, 16, 16, C), dtype=jnp.float32)
    y_cl = jax.block_until_ready(layer_norm(x_cl, weight, bias, eps, "channels_last"))
    assert jnp.allclose(y_cl, _ref_layer_norm(x_cl, weight, bias, eps, "channels_last"),
                        atol=1e-4, rtol=1e-4)

    # channels_first NCHW: transpose-free channel-axis reduction, N-batched blocks.
    x_cf = jax.random.normal(k2, (2, C, 16, 16), dtype=jnp.float32)
    y_cf = jax.block_until_ready(layer_norm(x_cf, weight, bias, eps, "channels_first"))
    assert jnp.allclose(y_cf, _ref_layer_norm(x_cf, weight, bias, eps, "channels_first"),
                        atol=1e-4, rtol=1e-4)

    # channels_last fallback path (row count not divisible by the fold factor).
    x_odd = jax.random.normal(k5, (3, 5, C), dtype=jnp.float32)
    y_odd = jax.block_until_ready(layer_norm(x_odd, weight, bias, eps, "channels_last"))
    assert jnp.allclose(y_odd, _ref_layer_norm(x_odd, weight, bias, eps, "channels_last"),
                        atol=1e-4, rtol=1e-4)

    # channels_last multi-block path with a ragged last block (no pad/slice).
    x_big = jax.random.normal(k6, (6, 64, 64, C), dtype=jnp.float32)
    y_big = jax.block_until_ready(layer_norm(x_big, weight, bias, eps, "channels_last"))
    assert jnp.allclose(y_big, _ref_layer_norm(x_big, weight, bias, eps, "channels_last"),
                        atol=1e-4, rtol=1e-4)

    # channels_last wide-channel path (C >= 128, no folding, lane-dense).
    C2 = 256
    weight2 = jax.random.normal(k7, (C2,), dtype=jnp.float32)
    bias2 = jax.random.normal(k8, (C2,), dtype=jnp.float32)
    x_wide = jax.random.normal(k9, (2, 8, C2), dtype=jnp.float32)
    y_wide = jax.block_until_ready(layer_norm(x_wide, weight2, bias2, eps, "channels_last"))
    assert jnp.allclose(y_wide, _ref_layer_norm(x_wide, weight2, bias2, eps, "channels_last"),
                        atol=1e-4, rtol=1e-4)

    print("KERNEL_OK")
</pallas_src>

<mosaic_0001>
module attributes {stable_mosaic.version = 11 : i64} {
  func.func @_ln_rows_kernel(%arg0: i32, %arg1: memref<128x128xf32, #tpu.memory_space<vmem>>, %arg2: memref<1x128xf32, #tpu.memory_space<vmem>>, %arg3: memref<1x128xf32, #tpu.memory_space<vmem>>, %arg4: memref<128x128xf32, #tpu.memory_space<vmem>>) attributes {dimension_semantics = [#tpu.dimension_semantics<parallel>], iteration_bounds = array<i64: 1>, scalar_prefetch = 0 : i64, scratch_operands = 0 : i64, tpu.core_type = #tpu.core_type<tc>, window_params = [{transform_indices = @transform_0, window_bounds = array<i64: 128, 128>}, {pipeline_mode = #tpu.pipeline_mode<synchronous>, transform_indices = @transform_1, window_bounds = array<i64: 1, 128>}, {pipeline_mode = #tpu.pipeline_mode<synchronous>, transform_indices = @transform_2, window_bounds = array<i64: 1, 128>}, {transform_indices = @transform_3, window_bounds = array<i64: 128, 128>}]} {
    %c0 = arith.constant 0 : index
    %c0_0 = arith.constant 0 : index
    %0 = vector.load %arg1[%c0, %c0_0] : memref<128x128xf32, #tpu.memory_space<vmem>>, vector<128x128xf32>
    %c0_1 = arith.constant 0 : index
    %c0_2 = arith.constant 0 : index
    %1 = vector.load %arg2[%c0_1, %c0_2] : memref<1x128xf32, #tpu.memory_space<vmem>>, vector<1x128xf32>
    %c0_3 = arith.constant 0 : index
    %c0_4 = arith.constant 0 : index
    %2 = vector.load %arg3[%c0_3, %c0_4] : memref<1x128xf32, #tpu.memory_space<vmem>>, vector<1x128xf32>
    %3 = vector.extract_strided_slice %0 {offsets = [0, 0], sizes = [128, 32], strides = [1, 1]} : vector<128x128xf32> to vector<128x32xf32>
    %cst = arith.constant dense<0.000000e+00> : vector<128xf32>
    %4 = vector.multi_reduction <add>, %3, %cst [1] : vector<128x32xf32> to vector<128xf32>
    %5 = vector.shape_cast %4 : vector<128xf32> to vector<128x1xf32>
    %cst_5 = arith.constant 3.200000e+01 : f32
    %6 = vector.broadcast %cst_5 : f32 to vector<128x1xf32>
    %7 = arith.divf %5, %6 : vector<128x1xf32>
    %8 = vector.broadcast %7 : vector<128x1xf32> to vector<128x32xf32>
    %9 = arith.subf %3, %8 : vector<128x32xf32>
    %10 = arith.mulf %9, %9 : vector<128x32xf32>
    %cst_6 = arith.constant dense<0.000000e+00> : vector<128xf32>
    %11 = vector.multi_reduction <add>, %10, %cst_6 [1] : vector<128x32xf32> to vector<128xf32>
    %12 = vector.shape_cast %11 : vector<128xf32> to vector<128x1xf32>
    %cst_7 = arith.constant 3.200000e+01 : f32
    %13 = vector.broadcast %cst_7 : f32 to vector<128x1xf32>
    %14 = arith.divf %12, %13 : vector<128x1xf32>
    %cst_8 = arith.constant 9.99999997E-7 : f32
    %15 = vector.broadcast %cst_8 : f32 to vector<128x1xf32>
    %16 = arith.addf %14, %15 : vector<128x1xf32>
    %17 = math.rsqrt %16 : vector<128x1xf32>
    %18 = vector.broadcast %17 : vector<128x1xf32> to vector<128x32xf32>
    %19 = arith.mulf %9, %18 : vector<128x32xf32>
    %20 = vector.extract_strided_slice %0 {offsets = [0, 32], sizes = [128, 32], strides = [1, 1]} : vector<128x128xf32> to vector<128x32xf32>
    %cst_9 = arith.constant dense<0.000000e+00> : vector<128xf32>
    %21 = vector.multi_reduction <add>, %20, %cst_9 [1] : vector<128x32xf32> to vector<128xf32>
    %22 = vector.shape_cast %21 : vector<128xf32> to vector<128x1xf32>
    %cst_10 = arith.constant 3.200000e+01 : f32
    %23 = vector.broadcast %cst_10 : f32 to vector<128x1xf32>
    %24 = arith.divf %22, %23 : vector<128x1xf32>
    %25 = vector.broadcast %24 : vector<128x1xf32> to vector<128x32xf32>
    %26 = arith.subf %20, %25 : vector<128x32xf32>
    %27 = arith.mulf %26, %26 : vector<128x32xf32>
    %cst_11 = arith.constant dense<0.000000e+00> : vector<128xf32>
    %28 = vector.multi_reduction <add>, %27, %cst_11 [1] : vector<128x32xf32> to vector<128xf32>
    %29 = vector.shape_cast %28 : vector<128xf32> to vector<128x1xf32>
    %cst_12 = arith.constant 3.200000e+01 : f32
    %30 = vector.broadcast %cst_12 : f32 to vector<128x1xf32>
    %31 = arith.divf %29, %30 : vector<128x1xf32>
    %cst_13 = arith.constant 9.99999997E-7 : f32
    %32 = vector.broadcast %cst_13 : f32 to vector<128x1xf32>
    %33 = arith.addf %31, %32 : vector<128x1xf32>
    %34 = math.rsqrt %33 : vector<128x1xf32>
    %35 = vector.broadcast %34 : vector<128x1xf32> to vector<128x32xf32>
    %36 = arith.mulf %26, %35 : vector<128x32xf32>
    %37 = vector.extract_strided_slice %0 {offsets = [0, 64], sizes = [128, 32], strides = [1, 1]} : vector<128x128xf32> to vector<128x32xf32>
    %cst_14 = arith.constant dense<0.000000e+00> : vector<128xf32>
    %38 = vector.multi_reduction <add>, %37, %cst_14 [1] : vector<128x32xf32> to vector<128xf32>
    %39 = vector.shape_cast %38 : vector<128xf32> to vector<128x1xf32>
    %cst_15 = arith.constant 3.200000e+01 : f32
    %40 = vector.broadcast %cst_15 : f32 to vector<128x1xf32>
    %41 = arith.divf %39, %40 : vector<128x1xf32>
    %42 = vector.broadcast %41 : vector<128x1xf32> to vector<128x32xf32>
    %43 = arith.subf %37, %42 : vector<128x32xf32>
    %44 = arith.mulf %43, %43 : vector<128x32xf32>
    %cst_16 = arith.constant dense<0.000000e+00> : vector<128xf32>
    %45 = vector.multi_reduction <add>, %44, %cst_16 [1] : vector<128x32xf32> to vector<128xf32>
    %46 = vector.shape_cast %45 : vector<128xf32> to vector<128x1xf32>
    %cst_17 = arith.constant 3.200000e+01 : f32
    %47 = vector.broadcast %cst_17 : f32 to vector<128x1xf32>
    %48 = arith.divf %46, %47 : vector<128x1xf32>
    %cst_18 = arith.constant 9.99999997E-7 : f32
    %49 = vector.broadcast %cst_18 : f32 to vector<128x1xf32>
    %50 = arith.addf %48, %49 : vector<128x1xf32>
    %51 = math.rsqrt %50 : vector<128x1xf32>
    %52 = vector.broadcast %51 : vector<128x1xf32> to vector<128x32xf32>
    %53 = arith.mulf %43, %52 : vector<128x32xf32>
    %54 = vector.extract_strided_slice %0 {offsets = [0, 96], sizes = [128, 32], strides = [1, 1]} : vector<128x128xf32> to vector<128x32xf32>
    %cst_19 = arith.constant dense<0.000000e+00> : vector<128xf32>
    %55 = vector.multi_reduction <add>, %54, %cst_19 [1] : vector<128x32xf32> to vector<128xf32>
    %56 = vector.shape_cast %55 : vector<128xf32> to vector<128x1xf32>
    %cst_20 = arith.constant 3.200000e+01 : f32
    %57 = vector.broadcast %cst_20 : f32 to vector<128x1xf32>
    %58 = arith.divf %56, %57 : vector<128x1xf32>
    %59 = vector.broadcast %58 : vector<128x1xf32> to vector<128x32xf32>
    %60 = arith.subf %54, %59 : vector<128x32xf32>
    %61 = arith.mulf %60, %60 : vector<128x32xf32>
    %cst_21 = arith.constant dense<0.000000e+00> : vector<128xf32>
    %62 = vector.multi_reduction <add>, %61, %cst_21 [1] : vector<128x32xf32> to vector<128xf32>
    %63 = vector.shape_cast %62 : vector<128xf32> to vector<128x1xf32>
    %cst_22 = arith.constant 3.200000e+01 : f32
    %64 = vector.broadcast %cst_22 : f32 to vector<128x1xf32>
    %65 = arith.divf %63, %64 : vector<128x1xf32>
    %cst_23 = arith.constant 9.99999997E-7 : f32
    %66 = vector.broadcast %cst_23 : f32 to vector<128x1xf32>
    %67 = arith.addf %65, %66 : vector<128x1xf32>
    %68 = math.rsqrt %67 : vector<128x1xf32>
    %69 = vector.broadcast %68 : vector<128x1xf32> to vector<128x32xf32>
    %70 = arith.mulf %60, %69 : vector<128x32xf32>
    %71 = tpu.concatenate %19, %36, %53, %70 in 1 : vector<128x32xf32>, vector<128x32xf32>, vector<128x32xf32>, vector<128x32xf32> -> vector<128x128xf32>
    %72 = vector.broadcast %1 : vector<1x128xf32> to vector<128x128xf32>
    %73 = arith.mulf %71, %72 : vector<128x128xf32>
    %74 = vector.broadcast %2 : vector<1x128xf32> to vector<128x128xf32>
    %75 = arith.addf %73, %74 : vector<128x128xf32>
    %c0_24 = arith.constant 0 : index
    %c0_25 = arith.constant 0 : index
    %76 = vector.load %arg4[%c0_24, %c0_25] : memref<128x128xf32, #tpu.memory_space<vmem>>, vector<128x128xf32>
    tpu.vector_store %arg4[%c0_24, %c0_25], %75 {strides = array<i32>} : memref<128x128xf32, #tpu.memory_space<vmem>>, vector<128x128xf32>,
    return
  }
  func.func @transform_0(%arg0: i32) -> (i32, i32) {
    %c0_i32 = arith.constant 0 : i32
    %c0_i32_0 = arith.constant 0 : i32
    return %arg0, %c0_i32 : i32, i32
  }
  func.func @transform_1(%arg0: i32) -> (i32, i32) {
    %c0_i32 = arith.constant 0 : i32
    %c0_i32_0 = arith.constant 0 : i32
    %c0_i32_1 = arith.constant 0 : i32
    return %c0_i32, %c0_i32_0 : i32, i32
  }
  func.func @transform_2(%arg0: i32) -> (i32, i32) {
    %c0_i32 = arith.constant 0 : i32
    %c0_i32_0 = arith.constant 0 : i32
    %c0_i32_1 = arith.constant 0 : i32
    return %c0_i32, %c0_i32_0 : i32, i32
  }
  func.func @transform_3(%arg0: i32) -> (i32, i32) {
    %c0_i32 = arith.constant 0 : i32
    %c0_i32_0 = arith.constant 0 : i32
    return %arg0, %c0_i32 : i32, i32
  }
}

</mosaic_0001>

<llo_original>
// kernel: tpu_custom_call.1
$region0: #{tpu_custom_call.1}
  #allocation0 [shape = 'u32[]', space=smem, size = 0x4, offset = 0x4, fixed_abs, tag = 'smem constant byte address 0x4 - core index']
  #allocation1 [shape = 'u32[144,128]{1,0:T(1,128)}', space=vmem, size = 0x12000, scoped, tag = 'internal scratch']
  %s0 = inlined_call_operand.hbm [shape: f32[128,128], index: 0, kind: input, shape index: {}]
  %s1 = inlined_call_operand.vmem [shape: f32[1,128], index: 1, kind: input, shape index: {}]
  %s2 = inlined_call_operand.vmem [shape: f32[1,128], index: 2, kind: input, shape index: {}]
  %s3 = inlined_call_operand.hbm [shape: f32[128,128], index: 3, kind: output, shape index: {}]
  %s4 = sld [smem:[#allocation0]]
  $region26: #{tpu_custom_call.1} parent=0
    _
  %s6 = ssub.s32 1, %s4
  %s7 = scalar_select 0, %s6, %s4
  $region1: #{tpu_custom_call.1} parent=0
    #allocation2 [shape = 'u8[65536]{0}', space=vmem, size = 0x10000, scoped, tag = 'input window, operand 0, single buffered']
    #allocation3 [shape = 's32[1]{0}', space=sflag, size = 0x4, scoped, tag = 'scoped memory for tpu_custom_call.1']
    #allocation4 [shape = 's32[1]{0}', space=sflag, size = 0x4, scoped, tag = 'scoped memory for tpu_custom_call.1']
    #allocation5 [shape = 'u8[65536]{0}', space=vmem, size = 0x10000, scoped, tag = 'output window, operand 0, single buffered']
    %8 = vsyncpa [#allocation3], 0
    %9 = vsyncpa [#allocation4], 0
    // Predicated region
    $region2: #{tpu_custom_call.1} parent=1 // pred_check
      _
    $region3: #{tpu_custom_call.1} parent=1 // pred_check_branch
      %11 = sbr.rel (0) target = $region5
    $region4: #{tpu_custom_call.1} parent=1 // pred_region
      %s13 = ssub.s32 2048, 2048
      %14 = vsyncadd [#allocation3], %s13
      %s15 = sshll.u32 [#allocation2], 4
      %s16 = int_to_ptr.vmem [resolvable:$true] %s15
      %21 = dma.hbm_to_vmem [thread:$0]  %s0, 2048, %s16, [#allocation3], 128, 128, 8
    $region5: #{tpu_custom_call.1} parent=1 // pred_fallthru
      _
    // Predicated region
    $region6: #{tpu_custom_call.1} parent=1 // pred_check
      _
    $region7: #{tpu_custom_call.1} parent=1 // pred_check_branch
      %23 = sbr.rel (0) target = $region9
    $region8: #{tpu_custom_call.1} parent=1 // pred_region
      _
    $region9: #{tpu_custom_call.1} parent=1 // pred_fallthru
      _
    // Predicated region
    $region10: #{tpu_custom_call.1} parent=1 // pred_check
      _
    $region11: #{tpu_custom_call.1} parent=1 // pred_check_branch
      %25 = sbr.rel (0) target = $region13
    $region12: #{tpu_custom_call.1} parent=1 // pred_region
      _
    $region13: #{tpu_custom_call.1} parent=1 // pred_fallthru
      _
    // Predicated region
    $region14: #{tpu_custom_call.1} parent=1 // pred_check
      _
    $region15: #{tpu_custom_call.1} parent=1 // pred_check_branch
      %27 = sbr.rel (0) target = $region17
    $region16: #{tpu_custom_call.1} parent=1 // pred_region
      %28 = dma.done [#allocation3], 2048
    $region17: #{tpu_custom_call.1} parent=1 // pred_fallthru
      _
    %v29 = vld [vmem:[#allocation2] sm:$0xff]
    %v30 = vld [vmem:[#allocation2 + $0x8] sm:$0xff]
    %v31 = vld [vmem:[#allocation2 + $0x10] sm:$0xff]
    %v32 = vld [vmem:[#allocation2 + $0x18] sm:$0xff]
    %v33 = vld [vmem:[#allocation2 + $0x20] sm:$0xff]
    %v34 = vld [vmem:[#allocation2 + $0x28] sm:$0xff]
    %v35 = vld [vmem:[#allocation2 + $0x30] sm:$0xff]
    %v36 = vld [vmem:[#allocation2 + $0x38] sm:$0xff]
    %v37 = vld [vmem:[#allocation2 + $0x40] sm:$0xff]
    %v38 = vld [vmem:[#allocation2 + $0x48] sm:$0xff]
    %v39 = vld [vmem:[#allocation2 + $0x50] sm:$0xff]
    %v40 = vld [vmem:[#allocation2 + $0x58] sm:$0xff]
    %v41 = vld [vmem:[#allocation2 + $0x60] sm:$0xff]
    %v42 = vld [vmem:[#allocation2 + $0x68] sm:$0xff]
    %v43 = vld [vmem:[#allocation2 + $0x70] sm:$0xff]
    %v44 = vld [vmem:[#allocation2 + $0x78] sm:$0xff]
    %v45 = vld [vmem:[%s1] sm:$0x1]
    %v46 = vld [vmem:[%s2] sm:$0x1]
    %vm47 = vcmask 261120
    %v48 = vsel %vm47, %v29, 0.0
    %49 = vadd.xlane.f32.xlu0 %v48
    %v50 = vpop.xlane.xlu0 %49
    %v51 = vsel %vm47, %v30, 0.0
    %52 = vadd.xlane.f32.xlu0 %v51
    %v53 = vpop.xlane.xlu0 %52
    %v54 = vsel %vm47, %v31, 0.0
    %55 = vadd.xlane.f32.xlu0 %v54
    %v56 = vpop.xlane.xlu0 %55
    %v57 = vsel %vm47, %v32, 0.0
    %58 = vadd.xlane.f32.xlu0 %v57
    %v59 = vpop.xlane.xlu0 %58
    %v60 = vsel %vm47, %v33, 0.0
    %61 = vadd.xlane.f32.xlu0 %v60
    %v62 = vpop.xlane.xlu0 %61
    %v63 = vsel %vm47, %v34, 0.0
    %64 = vadd.xlane.f32.xlu0 %v63
    %v65 = vpop.xlane.xlu0 %64
    %v66 = vsel %vm47, %v35, 0.0
    %67 = vadd.xlane.f32.xlu0 %v66
    %v68 = vpop.xlane.xlu0 %67
    %v69 = vsel %vm47, %v36, 0.0
    %70 = vadd.xlane.f32.xlu0 %v69
    %v71 = vpop.xlane.xlu0 %70
    %v72 = vsel %vm47, %v37, 0.0
    %73 = vadd.xlane.f32.xlu0 %v72
    %v74 = vpop.xlane.xlu0 %73
    %v75 = vsel %vm47, %v38, 0.0
    %76 = vadd.xlane.f32.xlu0 %v75
    %v77 = vpop.xlane.xlu0 %76
    %v78 = vsel %vm47, %v39, 0.0
    %79 = vadd.xlane.f32.xlu0 %v78
    %v80 = vpop.xlane.xlu0 %79
    %v81 = vsel %vm47, %v40, 0.0
    %82 = vadd.xlane.f32.xlu0 %v81
    %v83 = vpop.xlane.xlu0 %82
    %v84 = vsel %vm47, %v41, 0.0
    %85 = vadd.xlane.f32.xlu0 %v84
    %v86 = vpop.xlane.xlu0 %85
    %v87 = vsel %vm47, %v42, 0.0
    %88 = vadd.xlane.f32.xlu0 %v87
    %v89 = vpop.xlane.xlu0 %88
    %v90 = vsel %vm47, %v43, 0.0
    %91 = vadd.xlane.f32.xlu0 %v90
    %v92 = vpop.xlane.xlu0 %91
    %v93 = vsel %vm47, %v44, 0.0
    %94 = vadd.xlane.f32.xlu0 %v93
    %v95 = vpop.xlane.xlu0 %94
    %v96 = vrcp.pop 32.0
    %v97 = vmul.f32 %v50, %v96
    %v98 = vmul.f32 %v53, %v96
    %v99 = vmul.f32 %v56, %v96
    %v100 = vmul.f32 %v59, %v96
    %v101 = vmul.f32 %v62, %v96
    %v102 = vmul.f32 %v65, %v96
    %v103 = vmul.f32 %v68, %v96
    %v104 = vmul.f32 %v71, %v96
    %v105 = vmul.f32 %v74, %v96
    %v106 = vmul.f32 %v77, %v96
    %v107 = vmul.f32 %v80, %v96
    %v108 = vmul.f32 %v83, %v96
    %v109 = vmul.f32 %v86, %v96
    %v110 = vmul.f32 %v89, %v96
    %v111 = vmul.f32 %v92, %v96
    %v112 = vmul.f32 %v95, %v96
    %v113 = vsub.f32 %v29, %v97
    %v114 = vsub.f32 %v30, %v98
    %v115 = vsub.f32 %v31, %v99
    %v116 = vsub.f32 %v32, %v100
    %v117 = vsub.f32 %v33, %v101
    %v118 = vsub.f32 %v34, %v102
    %v119 = vsub.f32 %v35, %v103
    %v120 = vsub.f32 %v36, %v104
    %v121 = vsub.f32 %v37, %v105
    %v122 = vsub.f32 %v38, %v106
    %v123 = vsub.f32 %v39, %v107
    %v124 = vsub.f32 %v40, %v108
    %v125 = vsub.f32 %v41, %v109
    %v126 = vsub.f32 %v42, %v110
    %v127 = vsub.f32 %v43, %v111
    %v128 = vsub.f32 %v44, %v112
    %v129 = vmul.f32 %v113, %v113
    %v130 = vmul.f32 %v114, %v114
    %v131 = vmul.f32 %v115, %v115
    %v132 = vmul.f32 %v116, %v116
    %v133 = vmul.f32 %v117, %v117
    %v134 = vmul.f32 %v118, %v118
    %v135 = vmul.f32 %v119, %v119
    %v136 = vmul.f32 %v120, %v120
    %v137 = vmul.f32 %v121, %v121
    %v138 = vmul.f32 %v122, %v122
    %v139 = vmul.f32 %v123, %v123
    %v140 = vmul.f32 %v124, %v124
    %v141 = vmul.f32 %v125, %v125
    %v142 = vmul.f32 %v126, %v126
    %v143 = vmul.f32 %v127, %v127
    %v144 = vmul.f32 %v128, %v128
    %v145 = vsel %vm47, %v129, 0.0
    %146 = vadd.xlane.f32.xlu0 %v145
    %v147 = vpop.xlane.xlu0 %146
    %v148 = vsel %vm47, %v130, 0.0
    %149 = vadd.xlane.f32.xlu0 %v148
    %v150 = vpop.xlane.xlu0 %149
    %v151 = vsel %vm47, %v131, 0.0
    %152 = vadd.xlane.f32.xlu0 %v151
    %v153 = vpop.xlane.xlu0 %152
    %v154 = vsel %vm47, %v132, 0.0
    %155 = vadd.xlane.f32.xlu0 %v154
    %v156 = vpop.xlane.xlu0 %155
    %v157 = vsel %vm47, %v133, 0.0
    %158 = vadd.xlane.f32.xlu0 %v157
    %v159 = vpop.xlane.xlu0 %158
    %v160 = vsel %vm47, %v134, 0.0
    %161 = vadd.xlane.f32.xlu0 %v160
    %v162 = vpop.xlane.xlu0 %161
    %v163 = vsel %vm47, %v135, 0.0
    %164 = vadd.xlane.f32.xlu0 %v163
    %v165 = vpop.xlane.xlu0 %164
    %v166 = vsel %vm47, %v136, 0.0
    %167 = vadd.xlane.f32.xlu0 %v166
    %v168 = vpop.xlane.xlu0 %167
    %v169 = vsel %vm47, %v137, 0.0
    %170 = vadd.xlane.f32.xlu0 %v169
    %v171 = vpop.xlane.xlu0 %170
    %v172 = vsel %vm47, %v138, 0.0
    %173 = vadd.xlane.f32.xlu0 %v172
    %v174 = vpop.xlane.xlu0 %173
    %v175 = vsel %vm47, %v139, 0.0
    %176 = vadd.xlane.f32.xlu0 %v175
    %v177 = vpop.xlane.xlu0 %176
    %v178 = vsel %vm47, %v140, 0.0
    %179 = vadd.xlane.f32.xlu0 %v178
    %v180 = vpop.xlane.xlu0 %179
    %v181 = vsel %vm47, %v141, 0.0
    %182 = vadd.xlane.f32.xlu0 %v181
    %v183 = vpop.xlane.xlu0 %182
    %v184 = vsel %vm47, %v142, 0.0
    %185 = vadd.xlane.f32.xlu0 %v184
    %v186 = vpop.xlane.xlu0 %185
    %v187 = vsel %vm47, %v143, 0.0
    %188 = vadd.xlane.f32.xlu0 %v187
    %v189 = vpop.xlane.xlu0 %188
    %v190 = vsel %vm47, %v144, 0.0
    %191 = vadd.xlane.f32.xlu0 %v190
    %v192 = vpop.xlane.xlu0 %191
    %v193 = vmul.f32 %v147, %v96
    %v194 = vmul.f32 %v150, %v96
    %v195 = vmul.f32 %v153, %v96
    %v196 = vmul.f32 %v156, %v96
    %v197 = vmul.f32 %v159, %v96
    %v198 = vmul.f32 %v162, %v96
    %v199 = vmul.f32 %v165, %v96
    %v200 = vmul.f32 %v168, %v96
    %v201 = vmul.f32 %v171, %v96
    %v202 = vmul.f32 %v174, %v96
    %v203 = vmul.f32 %v177, %v96
    %v204 = vmul.f32 %v180, %v96
    %v205 = vmul.f32 %v183, %v96
    %v206 = vmul.f32 %v186, %v96
    %v207 = vmul.f32 %v189, %v96
    %v208 = vmul.f32 %v192, %v96
    %v209 = vadd.f32 %v193, 1e-06
    %v210 = vadd.f32 %v194, 1e-06
    %v211 = vadd.f32 %v195, 1e-06
    %v212 = vadd.f32 %v196, 1e-06
    %v213 = vadd.f32 %v197, 1e-06
    %v214 = vadd.f32 %v198, 1e-06
    %v215 = vadd.f32 %v199, 1e-06
    %v216 = vadd.f32 %v200, 1e-06
    %v217 = vadd.f32 %v201, 1e-06
    %v218 = vadd.f32 %v202, 1e-06
    %v219 = vadd.f32 %v203, 1e-06
    %v220 = vadd.f32 %v204, 1e-06
    %v221 = vadd.f32 %v205, 1e-06
    %v222 = vadd.f32 %v206, 1e-06
    %v223 = vadd.f32 %v207, 1e-06
    %v224 = vadd.f32 %v208, 1e-06
    %v225 = vrsqrt.pop %v209
    %v226 = vrsqrt.pop %v210
    %v227 = vrsqrt.pop %v211
    %v228 = vrsqrt.pop %v212
    %v229 = vrsqrt.pop %v213
    %v230 = vrsqrt.pop %v214
    %v231 = vrsqrt.pop %v215
    %v232 = vrsqrt.pop %v216
    %v233 = vrsqrt.pop %v217
    %v234 = vrsqrt.pop %v218
    %v235 = vrsqrt.pop %v219
    %v236 = vrsqrt.pop %v220
    %v237 = vrsqrt.pop %v221
    %v238 = vrsqrt.pop %v222
    %v239 = vrsqrt.pop %v223
    %v240 = vrsqrt.pop %v224
    %v241 = vmul.f32 %v113, %v225
    %v242 = vmul.f32 %v114, %v226
    %v243 = vmul.f32 %v115, %v227
    %v244 = vmul.f32 %v116, %v228
    %v245 = vmul.f32 %v117, %v229
    %v246 = vmul.f32 %v118, %v230
    %v247 = vmul.f32 %v119, %v231
    %v248 = vmul.f32 %v120, %v232
    %v249 = vmul.f32 %v121, %v233
    %v250 = vmul.f32 %v122, %v234
    %v251 = vmul.f32 %v123, %v235
    %v252 = vmul.f32 %v124, %v236
    %v253 = vmul.f32 %v125, %v237
    %v254 = vmul.f32 %v126, %v238
    %v255 = vmul.f32 %v127, %v239
    %v256 = vmul.f32 %v128, %v240
    %273 = vrot.lane.b32.xlu0 %v29, 96
    %v274 = vpop.permute.xlu0 %273
    %275 = vrot.lane.b32.xlu0 %v30, 96
    %v276 = vpop.permute.xlu0 %275
    %277 = vrot.lane.b32.xlu0 %v31, 96
    %v278 = vpop.permute.xlu0 %277
    %279 = vrot.lane.b32.xlu0 %v32, 96
    %v280 = vpop.permute.xlu0 %279
    %281 = vrot.lane.b32.xlu0 %v33, 96
    %v282 = vpop.permute.xlu0 %281
    %283 = vrot.lane.b32.xlu0 %v34, 96
    %v284 = vpop.permute.xlu0 %283
    %285 = vrot.lane.b32.xlu0 %v35, 96
    %v286 = vpop.permute.xlu0 %285
    %287 = vrot.lane.b32.xlu0 %v36, 96
    %v288 = vpop.permute.xlu0 %287
    %289 = vrot.lane.b32.xlu0 %v37, 96
    %v290 = vpop.permute.xlu0 %289
    %291 = vrot.lane.b32.xlu0 %v38, 96
    %v292 = vpop.permute.xlu0 %291
    %293 = vrot.lane.b32.xlu0 %v39, 96
    %v294 = vpop.permute.xlu0 %293
    %295 = vrot.lane.b32.xlu0 %v40, 96
    %v296 = vpop.permute.xlu0 %295
    %297 = vrot.lane.b32.xlu0 %v41, 96
    %v298 = vpop.permute.xlu0 %297
    %299 = vrot.lane.b32.xlu0 %v42, 96
    %v300 = vpop.permute.xlu0 %299
    %301 = vrot.lane.b32.xlu0 %v43, 96
    %v302 = vpop.permute.xlu0 %301
    %303 = vrot.lane.b32.xlu0 %v44, 96
    %v304 = vpop.permute.xlu0 %303
    %v321 = vsel %vm47, %v274, 0.0
    %322 = vadd.xlane.f32.xlu0 %v321
    %v323 = vpop.xlane.xlu0 %322
    %v324 = vsel %vm47, %v276, 0.0
    %325 = vadd.xlane.f32.xlu0 %v324
    %v326 = vpop.xlane.xlu0 %325
    %v327 = vsel %vm47, %v278, 0.0
    %328 = vadd.xlane.f32.xlu0 %v327
    %v329 = vpop.xlane.xlu0 %328
    %v330 = vsel %vm47, %v280, 0.0
    %331 = vadd.xlane.f32.xlu0 %v330
    %v332 = vpop.xlane.xlu0 %331
    %v333 = vsel %vm47, %v282, 0.0
    %334 = vadd.xlane.f32.xlu0 %v333
    %v335 = vpop.xlane.xlu0 %334
    %v336 = vsel %vm47, %v284, 0.0
    %337 = vadd.xlane.f32.xlu0 %v336
    %v338 = vpop.xlane.xlu0 %337
    %v339 = vsel %vm47, %v286, 0.0
    %340 = vadd.xlane.f32.xlu0 %v339
    %v341 = vpop.xlane.xlu0 %340
    %v342 = vsel %vm47, %v288, 0.0
    %343 = vadd.xlane.f32.xlu0 %v342
    %v344 = vpop.xlane.xlu0 %343
    %v345 = vsel %vm47, %v290, 0.0
    %346 = vadd.xlane.f32.xlu0 %v345
    %v347 = vpop.xlane.xlu0 %346
    %v348 = vsel %vm47, %v292, 0.0
    %349 = vadd.xlane.f32.xlu0 %v348
    %v350 = vpop.xlane.xlu0 %349
    %v351 = vsel %vm47, %v294, 0.0
    %352 = vadd.xlane.f32.xlu0 %v351
    %v353 = vpop.xlane.xlu0 %352
    %v354 = vsel %vm47, %v296, 0.0
    %355 = vadd.xlane.f32.xlu0 %v354
    %v356 = vpop.xlane.xlu0 %355
    %v357 = vsel %vm47, %v298, 0.0
    %358 = vadd.xlane.f32.xlu0 %v357
    %v359 = vpop.xlane.xlu0 %358
    %v360 = vsel %vm47, %v300, 0.0
    %361 = vadd.xlane.f32.xlu0 %v360
    %v362 = vpop.xlane.xlu0 %361
    %v363 = vsel %vm47, %v302, 0.0
    %364 = vadd.xlane.f32.xlu0 %v363
    %v365 = vpop.xlane.xlu0 %364
    %v366 = vsel %vm47, %v304, 0.0
    %367 = vadd.xlane.f32.xlu0 %v366
    %v368 = vpop.xlane.xlu0 %367
    %v369 = vmul.f32 %v323, %v96
    %v370 = vmul.f32 %v326, %v96
    %v371 = vmul.f32 %v329, %v96
    %v372 = vmul.f32 %v332, %v96
    %v373 = vmul.f32 %v335, %v96
    %v374 = vmul.f32 %v338, %v96
    %v375 = vmul.f32 %v341, %v96
    %v376 = vmul.f32 %v344, %v96
    %v377 = vmul.f32 %v347, %v96
    %v378 = vmul.f32 %v350, %v96
    %v379 = vmul.f32 %v353, %v96
    %v380 = vmul.f32 %v356, %v96
    %v381 = vmul.f32 %v359, %v96
    %v382 = vmul.f32 %v362, %v96
    %v383 = vmul.f32 %v365, %v96
    %v384 = vmul.f32 %v368, %v96
    %v385 = vsub.f32 %v29, %v369
    %v386 = vsub.f32 %v30, %v370
    %v387 = vsub.f32 %v31, %v371
    %v388 = vsub.f32 %v32, %v372
    %v389 = vsub.f32 %v33, %v373
    %v390 = vsub.f32 %v34, %v374
    %v391 = vsub.f32 %v35, %v375
    %v392 = vsub.f32 %v36, %v376
    %v393 = vsub.f32 %v37, %v377
    %v394 = vsub.f32 %v38, %v378
    %v395 = vsub.f32 %v39, %v379
    %v396 = vsub.f32 %v40, %v380
    %v397 = vsub.f32 %v41, %v381
    %v398 = vsub.f32 %v42, %v382
    %v399 = vsub.f32 %v43, %v383
    %v400 = vsub.f32 %v44, %v384
    %v401 = vmul.f32 %v385, %v385
    %v402 = vmul.f32 %v386, %v386
    %v403 = vmul.f32 %v387, %v387
    %v404 = vmul.f32 %v388, %v388
    %v405 = vmul.f32 %v389, %v389
    %v406 = vmul.f32 %v390, %v390
    %v407 = vmul.f32 %v391, %v391
    %v408 = vmul.f32 %v392, %v392
    %v409 = vmul.f32 %v393, %v393
    %v410 = vmul.f32 %v394, %v394
    %v411 = vmul.f32 %v395, %v395
    %v412 = vmul.f32 %v396, %v396
    %v413 = vmul.f32 %v397, %v397
    %v414 = vmul.f32 %v398, %v398
    %v415 = vmul.f32 %v399, %v399
    %v416 = vmul.f32 %v400, %v400
    %433 = vrot.lane.b32.xlu0 %v401, 96
    %v434 = vpop.permute.xlu0 %433
    %435 = vrot.lane.b32.xlu0 %v402, 96
    %v436 = vpop.permute.xlu0 %435
    %437 = vrot.lane.b32.xlu0 %v403, 96
    %v438 = vpop.permute.xlu0 %437
    %439 = vrot.lane.b32.xlu0 %v404, 96
    %v440 = vpop.permute.xlu0 %439
    %441 = vrot.lane.b32.xlu0 %v405, 96
    %v442 = vpop.permute.xlu0 %441
    %443 = vrot.lane.b32.xlu0 %v406, 96
    %v444 = vpop.permute.xlu0 %443
    %445 = vrot.lane.b32.xlu0 %v407, 96
    %v446 = vpop.permute.xlu0 %445
    %447 = vrot.lane.b32.xlu0 %v408, 96
    %v448 = vpop.permute.xlu0 %447
    %449 = vrot.lane.b32.xlu0 %v409, 96
    %v450 = vpop.permute.xlu0 %449
    %451 = vrot.lane.b32.xlu0 %v410, 96
    %v452 = vpop.permute.xlu0 %451
    %453 = vrot.lane.b32.xlu0 %v411, 96
    %v454 = vpop.permute.xlu0 %453
    %455 = vrot.lane.b32.xlu0 %v412, 96
    %v456 = vpop.permute.xlu0 %455
    %457 = vrot.lane.b32.xlu0 %v413, 96
    %v458 = vpop.permute.xlu0 %457
    %459 = vrot.lane.b32.xlu0 %v414, 96
    %v460 = vpop.permute.xlu0 %459
    %461 = vrot.lane.b32.xlu0 %v415, 96
    %v462 = vpop.permute.xlu0 %461
    %463 = vrot.lane.b32.xlu0 %v416, 96
    %v464 = vpop.permute.xlu0 %463
    %v481 = vsel %vm47, %v434, 0.0
    %482 = vadd.xlane.f32.xlu0 %v481
    %v483 = vpop.xlane.xlu0 %482
    %v484 = vsel %vm47, %v436, 0.0
    %485 = vadd.xlane.f32.xlu0 %v484
    %v486 = vpop.xlane.xlu0 %485
    %v487 = vsel %vm47, %v438, 0.0
    %488 = vadd.xlane.f32.xlu0 %v487
    %v489 = vpop.xlane.xlu0 %488
    %v490 = vsel %vm47, %v440, 0.0
    %491 = vadd.xlane.f32.xlu0 %v490
    %v492 = vpop.xlane.xlu0 %491
    %v493 = vsel %vm47, %v442, 0.0
    %494 = vadd.xlane.f32.xlu0 %v493
    %v495 = vpop.xlane.xlu0 %494
    %v496 = vsel %vm47, %v444, 0.0
    %497 = vadd.xlane.f32.xlu0 %v496
    %v498 = vpop.xlane.xlu0 %497
    %v499 = vsel %vm47, %v446, 0.0
    %500 = vadd.xlane.f32.xlu0 %v499
    %v501 = vpop.xlane.xlu0 %500
    %v502 = vsel %vm47, %v448, 0.0
    %503 = vadd.xlane.f32.xlu0 %v502
    %v504 = vpop.xlane.xlu0 %503
    %v505 = vsel %vm47, %v450, 0.0
    %506 = vadd.xlane.f32.xlu0 %v505
    %v507 = vpop.xlane.xlu0 %506
    %v508 = vsel %vm47, %v452, 0.0
    %509 = vadd.xlane.f32.xlu0 %v508
    %v510 = vpop.xlane.xlu0 %509
    %v511 = vsel %vm47, %v454, 0.0
    %512 = vadd.xlane.f32.xlu0 %v511
    %v513 = vpop.xlane.xlu0 %512
    %v514 = vsel %vm47, %v456, 0.0
    %515 = vadd.xlane.f32.xlu0 %v514
    %v516 = vpop.xlane.xlu0 %515
    %v517 = vsel %vm47, %v458, 0.0
    %518 = vadd.xlane.f32.xlu0 %v517
    %v519 = vpop.xlane.xlu0 %518
    %v520 = vsel %vm47, %v460, 0.0
    %521 = vadd.xlane.f32.xlu0 %v520
    %v522 = vpop.xlane.xlu0 %521
    %v523 = vsel %vm47, %v462, 0.0
    %524 = vadd.xlane.f32.xlu0 %v523
    %v525 = vpop.xlane.xlu0 %524
    %v526 = vsel %vm47, %v464, 0.0
    %527 = vadd.xlane.f32.xlu0 %v526
    %v528 = vpop.xlane.xlu0 %527
    %v529 = vmul.f32 %v483, %v96
    %v530 = vmul.f32 %v486, %v96
    %v531 = vmul.f32 %v489, %v96
    %v532 = vmul.f32 %v492, %v96
    %v533 = vmul.f32 %v495, %v96
    %v534 = vmul.f32 %v498, %v96
    %v535 = vmul.f32 %v501, %v96
    %v536 = vmul.f32 %v504, %v96
    %v537 = vmul.f32 %v507, %v96
    %v538 = vmul.f32 %v510, %v96
    %v539 = vmul.f32 %v513, %v96
    %v540 = vmul.f32 %v516, %v96
    %v541 = vmul.f32 %v519, %v96
    %v542 = vmul.f32 %v522, %v96
    %v543 = vmul.f32 %v525, %v96
    %v544 = vmul.f32 %v528, %v96
    %v545 = vadd.f32 %v529, 1e-06
    %v546 = vadd.f32 %v530, 1e-06
    %v547 = vadd.f32 %v531, 1e-06
    %v548 = vadd.f32 %v532, 1e-06
    %v549 = vadd.f32 %v533, 1e-06
    %v550 = vadd.f32 %v534, 1e-06
    %v551 = vadd.f32 %v535, 1e-06
    %v552 = vadd.f32 %v536, 1e-06
    %v553 = vadd.f32 %v537, 1e-06
    %v554 = vadd.f32 %v538, 1e-06
    %v555 = vadd.f32 %v539, 1e-06
    %v556 = vadd.f32 %v540, 1e-06
    %v557 = vadd.f32 %v541, 1e-06
    %v558 = vadd.f32 %v542, 1e-06
    %v559 = vadd.f32 %v543, 1e-06
    %v560 = vadd.f32 %v544, 1e-06
    %v561 = vrsqrt.pop %v545
    %v562 = vrsqrt.pop %v546
    %v563 = vrsqrt.pop %v547
    %v564 = vrsqrt.pop %v548
    %v565 = vrsqrt.pop %v549
    %v566 = vrsqrt.pop %v550
    %v567 = vrsqrt.pop %v551
    %v568 = vrsqrt.pop %v552
    %v569 = vrsqrt.pop %v553
    %v570 = vrsqrt.pop %v554
    %v571 = vrsqrt.pop %v555
    %v572 = vrsqrt.pop %v556
    %v573 = vrsqrt.pop %v557
    %v574 = vrsqrt.pop %v558
    %v575 = vrsqrt.pop %v559
    %v576 = vrsqrt.pop %v560
    %v577 = vmul.f32 %v385, %v561
    %v578 = vmul.f32 %v386, %v562
    %v579 = vmul.f32 %v387, %v563
    %v580 = vmul.f32 %v388, %v564
    %v581 = vmul.f32 %v389, %v565
    %v582 = vmul.f32 %v390, %v566
    %v583 = vmul.f32 %v391, %v567
    %v584 = vmul.f32 %v392, %v568
    %v585 = vmul.f32 %v393, %v569
    %v586 = vmul.f32 %v394, %v570
    %v587 = vmul.f32 %v395, %v571
    %v588 = vmul.f32 %v396, %v572
    %v589 = vmul.f32 %v397, %v573
    %v590 = vmul.f32 %v398, %v574
    %v591 = vmul.f32 %v399, %v575
    %v592 = vmul.f32 %v400, %v576
    %593 = vrot.lane.b32.xlu0 %v29, 64
    %v594 = vpop.permute.xlu0 %593
    %595 = vrot.lane.b32.xlu0 %v30, 64
    %v596 = vpop.permute.xlu0 %595
    %597 = vrot.lane.b32.xlu0 %v31, 64
    %v598 = vpop.permute.xlu0 %597
    %599 = vrot.lane.b32.xlu0 %v32, 64
    %v600 = vpop.permute.xlu0 %599
    %601 = vrot.lane.b32.xlu0 %v33, 64
    %v602 = vpop.permute.xlu0 %601
    %603 = vrot.lane.b32.xlu0 %v34, 64
    %v604 = vpop.permute.xlu0 %603
    %605 = vrot.lane.b32.xlu0 %v35, 64
    %v606 = vpop.permute.xlu0 %605
    %607 = vrot.lane.b32.xlu0 %v36, 64
    %v608 = vpop.permute.xlu0 %607
    %609 = vrot.lane.b32.xlu0 %v37, 64
    %v610 = vpop.permute.xlu0 %609
    %611 = vrot.lane.b32.xlu0 %v38, 64
    %v612 = vpop.permute.xlu0 %611
    %613 = vrot.lane.b32.xlu0 %v39, 64
    %v614 = vpop.permute.xlu0 %613
    %615 = vrot.lane.b32.xlu0 %v40, 64
    %v616 = vpop.permute.xlu0 %615
    %617 = vrot.lane.b32.xlu0 %v41, 64
    %v618 = vpop.permute.xlu0 %617
    %619 = vrot.lane.b32.xlu0 %v42, 64
    %v620 = vpop.permute.xlu0 %619
    %621 = vrot.lane.b32.xlu0 %v43, 64
    %v622 = vpop.permute.xlu0 %621
    %623 = vrot.lane.b32.xlu0 %v44, 64
    %v624 = vpop.permute.xlu0 %623
    %v641 = vsel %vm47, %v594, 0.0
    %642 = vadd.xlane.f32.xlu0 %v641
    %v643 = vpop.xlane.xlu0 %642
    %v644 = vsel %vm47, %v596, 0.0
    %645 = vadd.xlane.f32.xlu0 %v644
    %v646 = vpop.xlane.xlu0 %645
    %v647 = vsel %vm47, %v598, 0.0
    %648 = vadd.xlane.f32.xlu0 %v647
    %v649 = vpop.xlane.xlu0 %648
    %v650 = vsel %vm47, %v600, 0.0
    %651 = vadd.xlane.f32.xlu0 %v650
    %v652 = vpop.xlane.xlu0 %651
    %v653 = vsel %vm47, %v602, 0.0
    %654 = vadd.xlane.f32.xlu0 %v653
    %v655 = vpop.xlane.xlu0 %654
    %v656 = vsel %vm47, %v604, 0.0
    %657 = vadd.xlane.f32.xlu0 %v656
    %v658 = vpop.xlane.xlu0 %657
    %v659 = vsel %vm47, %v606, 0.0
    %660 = vadd.xlane.f32.xlu0 %v659
    %v661 = vpop.xlane.xlu0 %660
    %v662 = vsel %vm47, %v608, 0.0
    %663 = vadd.xlane.f32.xlu0 %v662
    %v664 = vpop.xlane.xlu0 %663
    %v665 = vsel %vm47, %v610, 0.0
    %666 = vadd.xlane.f32.xlu0 %v665
    %v667 = vpop.xlane.xlu0 %666
    %v668 = vsel %vm47, %v612, 0.0
    %669 = vadd.xlane.f32.xlu0 %v668
    %v670 = vpop.xlane.xlu0 %669
    %v671 = vsel %vm47, %v614, 0.0
    %672 = vadd.xlane.f32.xlu0 %v671
    %v673 = vpop.xlane.xlu0 %672
    %v674 = vsel %vm47, %v616, 0.0
    %675 = vadd.xlane.f32.xlu0 %v674
    %v676 = vpop.xlane.xlu0 %675
    %v677 = vsel %vm47, %v618, 0.0
    %678 = vadd.xlane.f32.xlu0 %v677
    %v679 = vpop.xlane.xlu0 %678
    %v680 = vsel %vm47, %v620, 0.0
    %681 = vadd.xlane.f32.xlu0 %v680
    %v682 = vpop.xlane.xlu0 %681
    %v683 = vsel %vm47, %v622, 0.0
    %684 = vadd.xlane.f32.xlu0 %v683
    %v685 = vpop.xlane.xlu0 %684
    %v686 = vsel %vm47, %v624, 0.0
    %687 = vadd.xlane.f32.xlu0 %v686
    %v688 = vpop.xlane.xlu0 %687
    %v689 = vmul.f32 %v643, %v96
    %v690 = vmul.f32 %v646, %v96
    %v691 = vmul.f32 %v649, %v96
    %v692 = vmul.f32 %v652, %v96
    %v693 = vmul.f32 %v655, %v96
    %v694 = vmul.f32 %v658, %v96
    %v695 = vmul.f32 %v661, %v96
    %v696 = vmul.f32 %v664, %v96
    %v697 = vmul.f32 %v667, %v96
    %v698 = vmul.f32 %v670, %v96
    %v699 = vmul.f32 %v673, %v96
    %v700 = vmul.f32 %v676, %v96
    %v701 = vmul.f32 %v679, %v96
    %v702 = vmul.f32 %v682, %v96
    %v703 = vmul.f32 %v685, %v96
    %v704 = vmul.f32 %v688, %v96
    %v705 = vsub.f32 %v29, %v689
    %v706 = vsub.f32 %v30, %v690
    %v707 = vsub.f32 %v31, %v691
    %v708 = vsub.f32 %v32, %v692
    %v709 = vsub.f32 %v33, %v693
    %v710 = vsub.f32 %v34, %v694
    %v711 = vsub.f32 %v35, %v695
    %v712 = vsub.f32 %v36, %v696
    %v713 = vsub.f32 %v37, %v697
    %v714 = vsub.f32 %v38, %v698
    %v715 = vsub.f32 %v39, %v699
    %v716 = vsub.f32 %v40, %v700
    %v717 = vsub.f32 %v41, %v701
    %v718 = vsub.f32 %v42, %v702
    %v719 = vsub.f32 %v43, %v703
    %v720 = vsub.f32 %v44, %v704
    %v721 = vmul.f32 %v705, %v705
    %v722 = vmul.f32 %v706, %v706
    %v723 = vmul.f32 %v707, %v707
    %v724 = vmul.f32 %v708, %v708
    %v725 = vmul.f32 %v709, %v709
    %v726 = vmul.f32 %v710, %v710
    %v727 = vmul.f32 %v711, %v711
    %v728 = vmul.f32 %v712, %v712
    %v729 = vmul.f32 %v713, %v713
    %v730 = vmul.f32 %v714, %v714
    %v731 = vmul.f32 %v715, %v715
    %v732 = vmul.f32 %v716, %v716
    %v733 = vmul.f32 %v717, %v717
    %v734 = vmul.f32 %v718, %v718
    %v735 = vmul.f32 %v719, %v719
    %v736 = vmul.f32 %v720, %v720
    %753 = vrot.lane.b32.xlu0 %v721, 64
    %v754 = vpop.permute.xlu0 %753
    %755 = vrot.lane.b32.xlu0 %v722, 64
    %v756 = vpop.permute.xlu0 %755
    %757 = vrot.lane.b32.xlu0 %v723, 64
    %v758 = vpop.permute.xlu0 %757
    %759 = vrot.lane.b32.xlu0 %v724, 64
    %v760 = vpop.permute.xlu0 %759
    %761 = vrot.lane.b32.xlu0 %v725, 64
    %v762 = vpop.permute.xlu0 %761
    %763 = vrot.lane.b32.xlu0 %v726, 64
    %v764 = vpop.permute.xlu0 %763
    %765 = vrot.lane.b32.xlu0 %v727, 64
    %v766 = vpop.permute.xlu0 %765
    %767 = vrot.lane.b32.xlu0 %v728, 64
    %v768 = vpop.permute.xlu0 %767
    %769 = vrot.lane.b32.xlu0 %v729, 64
    %v770 = vpop.permute.xlu0 %769
    %771 = vrot.lane.b32.xlu0 %v730, 64
    %v772 = vpop.permute.xlu0 %771
    %773 = vrot.lane.b32.xlu0 %v731, 64
    %v774 = vpop.permute.xlu0 %773
    %775 = vrot.lane.b32.xlu0 %v732, 64
    %v776 = vpop.permute.xlu0 %775
    %777 = vrot.lane.b32.xlu0 %v733, 64
    %v778 = vpop.permute.xlu0 %777
    %779 = vrot.lane.b32.xlu0 %v734, 64
    %v780 = vpop.permute.xlu0 %779
    %781 = vrot.lane.b32.xlu0 %v735, 64
    %v782 = vpop.permute.xlu0 %781
    %783 = vrot.lane.b32.xlu0 %v736, 64
    %v784 = vpop.permute.xlu0 %783
    %v801 = vsel %vm47, %v754, 0.0
    %802 = vadd.xlane.f32.xlu0 %v801
    %v803 = vpop.xlane.xlu0 %802
    %v804 = vsel %vm47, %v756, 0.0
    %805 = vadd.xlane.f32.xlu0 %v804
    %v806 = vpop.xlane.xlu0 %805
    %v807 = vsel %vm47, %v758, 0.0
    %808 = vadd.xlane.f32.xlu0 %v807
    %v809 = vpop.xlane.xlu0 %808
    %v810 = vsel %vm47, %v760, 0.0
    %811 = vadd.xlane.f32.xlu0 %v810
    %v812 = vpop.xlane.xlu0 %811
    %v813 = vsel %vm47, %v762, 0.0
    %814 = vadd.xlane.f32.xlu0 %v813
    %v815 = vpop.xlane.xlu0 %814
    %v816 = vsel %vm47, %v764, 0.0
    %817 = vadd.xlane.f32.xlu0 %v816
    %v818 = vpop.xlane.xlu0 %817
    %v819 = vsel %vm47, %v766, 0.0
    %820 = vadd.xlane.f32.xlu0 %v819
    %v821 = vpop.xlane.xlu0 %820
    %v822 = vsel %vm47, %v768, 0.0
    %823 = vadd.xlane.f32.xlu0 %v822
    %v824 = vpop.xlane.xlu0 %823
    %v825 = vsel %vm47, %v770, 0.0
    %826 = vadd.xlane.f32.xlu0 %v825
    %v827 = vpop.xlane.xlu0 %826
    %v828 = vsel %vm47, %v772, 0.0
    %829 = vadd.xlane.f32.xlu0 %v828
    %v830 = vpop.xlane.xlu0 %829
    %v831 = vsel %vm47, %v774, 0.0
    %832 = vadd.xlane.f32.xlu0 %v831
    %v833 = vpop.xlane.xlu0 %832
    %v834 = vsel %vm47, %v776, 0.0
    %835 = vadd.xlane.f32.xlu0 %v834
    %v836 = vpop.xlane.xlu0 %835
    %v837 = vsel %vm47, %v778, 0.0
    %838 = vadd.xlane.f32.xlu0 %v837
    %v839 = vpop.xlane.xlu0 %838
    %v840 = vsel %vm47, %v780, 0.0
    %841 = vadd.xlane.f32.xlu0 %v840
    %v842 = vpop.xlane.xlu0 %841
    %v843 = vsel %vm47, %v782, 0.0
    %844 = vadd.xlane.f32.xlu0 %v843
    %v845 = vpop.xlane.xlu0 %844
    %v846 = vsel %vm47, %v784, 0.0
    %847 = vadd.xlane.f32.xlu0 %v846
    %v848 = vpop.xlane.xlu0 %847
    %v849 = vmul.f32 %v803, %v96
    %v850 = vmul.f32 %v806, %v96
    %v851 = vmul.f32 %v809, %v96
    %v852 = vmul.f32 %v812, %v96
    %v853 = vmul.f32 %v815, %v96
    %v854 = vmul.f32 %v818, %v96
    %v855 = vmul.f32 %v821, %v96
    %v856 = vmul.f32 %v824, %v96
    %v857 = vmul.f32 %v827, %v96
    %v858 = vmul.f32 %v830, %v96
    %v859 = vmul.f32 %v833, %v96
    %v860 = vmul.f32 %v836, %v96
    %v861 = vmul.f32 %v839, %v96
    %v862 = vmul.f32 %v842, %v96
    %v863 = vmul.f32 %v845, %v96
    %v864 = vmul.f32 %v848, %v96
    %v865 = vadd.f32 %v849, 1e-06
    %v866 = vadd.f32 %v850, 1e-06
    %v867 = vadd.f32 %v851, 1e-06
    %v868 = vadd.f32 %v852, 1e-06
    %v869 = vadd.f32 %v853, 1e-06
    %v870 = vadd.f32 %v854, 1e-06
    %v871 = vadd.f32 %v855, 1e-06
    %v872 = vadd.f32 %v856, 1e-06
    %v873 = vadd.f32 %v857, 1e-06
    %v874 = vadd.f32 %v858, 1e-06
    %v875 = vadd.f32 %v859, 1e-06
    %v876 = vadd.f32 %v860, 1e-06
    %v877 = vadd.f32 %v861, 1e-06
    %v878 = vadd.f32 %v862, 1e-06
    %v879 = vadd.f32 %v863, 1e-06
    %v880 = vadd.f32 %v864, 1e-06
    %v881 = vrsqrt.pop %v865
    %v882 = vrsqrt.pop %v866
    %v883 = vrsqrt.pop %v867
    %v884 = vrsqrt.pop %v868
    %v885 = vrsqrt.pop %v869
    %v886 = vrsqrt.pop %v870
    %v887 = vrsqrt.pop %v871
    %v888 = vrsqrt.pop %v872
    %v889 = vrsqrt.pop %v873
    %v890 = vrsqrt.pop %v874
    %v891 = vrsqrt.pop %v875
    %v892 = vrsqrt.pop %v876
    %v893 = vrsqrt.pop %v877
    %v894 = vrsqrt.pop %v878
    %v895 = vrsqrt.pop %v879
    %v896 = vrsqrt.pop %v880
    %v897 = vmul.f32 %v705, %v881
    %v898 = vmul.f32 %v706, %v882
    %v899 = vmul.f32 %v707, %v883
    %v900 = vmul.f32 %v708, %v884
    %v901 = vmul.f32 %v709, %v885
    %v902 = vmul.f32 %v710, %v886
    %v903 = vmul.f32 %v711, %v887
    %v904 = vmul.f32 %v712, %v888
    %v905 = vmul.f32 %v713, %v889
    %v906 = vmul.f32 %v714, %v890
    %v907 = vmul.f32 %v715, %v891
    %v908 = vmul.f32 %v716, %v892
    %v909 = vmul.f32 %v717, %v893
    %v910 = vmul.f32 %v718, %v894
    %v911 = vmul.f32 %v719, %v895
    %v912 = vmul.f32 %v720, %v896
    %913 = vrot.lane.b32.xlu0 %v29, 32
    %v914 = vpop.permute.xlu0 %913
    %915 = vrot.lane.b32.xlu0 %v30, 32
    %v916 = vpop.permute.xlu0 %915
    %917 = vrot.lane.b32.xlu0 %v31, 32
    %v918 = vpop.permute.xlu0 %917
    %919 = vrot.lane.b32.xlu0 %v32, 32
    %v920 = vpop.permute.xlu0 %919
    %921 = vrot.lane.b32.xlu0 %v33, 32
    %v922 = vpop.permute.xlu0 %921
    %923 = vrot.lane.b32.xlu0 %v34, 32
    %v924 = vpop.permute.xlu0 %923
    %925 = vrot.lane.b32.xlu0 %v35, 32
    %v926 = vpop.permute.xlu0 %925
    %927 = vrot.lane.b32.xlu0 %v36, 32
    %v928 = vpop.permute.xlu0 %927
    %929 = vrot.lane.b32.xlu0 %v37, 32
    %v930 = vpop.permute.xlu0 %929
    %931 = vrot.lane.b32.xlu0 %v38, 32
    %v932 = vpop.permute.xlu0 %931
    %933 = vrot.lane.b32.xlu0 %v39, 32
    %v934 = vpop.permute.xlu0 %933
    %935 = vrot.lane.b32.xlu0 %v40, 32
    %v936 = vpop.permute.xlu0 %935
    %937 = vrot.lane.b32.xlu0 %v41, 32
    %v938 = vpop.permute.xlu0 %937
    %939 = vrot.lane.b32.xlu0 %v42, 32
    %v940 = vpop.permute.xlu0 %939
    %941 = vrot.lane.b32.xlu0 %v43, 32
    %v942 = vpop.permute.xlu0 %941
    %943 = vrot.lane.b32.xlu0 %v44, 32
    %v944 = vpop.permute.xlu0 %943
    %v961 = vsel %vm47, %v914, 0.0
    %962 = vadd.xlane.f32.xlu0 %v961
    %v963 = vpop.xlane.xlu0 %962
    %v964 = vsel %vm47, %v916, 0.0
    %965 = vadd.xlane.f32.xlu0 %v964
    %v966 = vpop.xlane.xlu0 %965
    %v967 = vsel %vm47, %v918, 0.0
    %968 = vadd.xlane.f32.xlu0 %v967
    %v969 = vpop.xlane.xlu0 %968
    %v970 = vsel %vm47, %v920, 0.0
    %971 = vadd.xlane.f32.xlu0 %v970
    %v972 = vpop.xlane.xlu0 %971
    %v973 = vsel %vm47, %v922, 0.0
    %974 = vadd.xlane.f32.xlu0 %v973
    %v975 = vpop.xlane.xlu0 %974
    %v976 = vsel %vm47, %v924, 0.0
    %977 = vadd.xlane.f32.xlu0 %v976
    %v978 = vpop.xlane.xlu0 %977
    %v979 = vsel %vm47, %v926, 0.0
    %980 = vadd.xlane.f32.xlu0 %v979
    %v981 = vpop.xlane.xlu0 %980
    %v982 = vsel %vm47, %v928, 0.0
    %983 = vadd.xlane.f32.xlu0 %v982
    %v984 = vpop.xlane.xlu0 %983
    %v985 = vsel %vm47, %v930, 0.0
    %986 = vadd.xlane.f32.xlu0 %v985
    %v987 = vpop.xlane.xlu0 %986
    %v988 = vsel %vm47, %v932, 0.0
    %989 = vadd.xlane.f32.xlu0 %v988
    %v990 = vpop.xlane.xlu0 %989
    %v991 = vsel %vm47, %v934, 0.0
    %992 = vadd.xlane.f32.xlu0 %v991
    %v993 = vpop.xlane.xlu0 %992
    %v994 = vsel %vm47, %v936, 0.0
    %995 = vadd.xlane.f32.xlu0 %v994
    %v996 = vpop.xlane.xlu0 %995
    %v997 = vsel %vm47, %v938, 0.0
    %998 = vadd.xlane.f32.xlu0 %v997
    %v999 = vpop.xlane.xlu0 %998
    %v1000 = vsel %vm47, %v940, 0.0
    %1001 = vadd.xlane.f32.xlu0 %v1000
    %v1002 = vpop.xlane.xlu0 %1001
    %v1003 = vsel %vm47, %v942, 0.0
    %1004 = vadd.xlane.f32.xlu0 %v1003
    %v1005 = vpop.xlane.xlu0 %1004
    %v1006 = vsel %vm47, %v944, 0.0
    %1007 = vadd.xlane.f32.xlu0 %v1006
    %v1008 = vpop.xlane.xlu0 %1007
    %v1009 = vmul.f32 %v963, %v96
    %v1010 = vmul.f32 %v966, %v96
    %v1011 = vmul.f32 %v969, %v96
    %v1012 = vmul.f32 %v972, %v96
    %v1013 = vmul.f32 %v975, %v96
    %v1014 = vmul.f32 %v978, %v96
    %v1015 = vmul.f32 %v981, %v96
    %v1016 = vmul.f32 %v984, %v96
    %v1017 = vmul.f32 %v987, %v96
    %v1018 = vmul.f32 %v990, %v96
    %v1019 = vmul.f32 %v993, %v96
    %v1020 = vmul.f32 %v996, %v96
    %v1021 = vmul.f32 %v999, %v96
    %v1022 = vmul.f32 %v1002, %v96
    %v1023 = vmul.f32 %v1005, %v96
    %v1024 = vmul.f32 %v1008, %v96
    %v1025 = vsub.f32 %v29, %v1009
    %v1026 = vsub.f32 %v30, %v1010
    %v1027 = vsub.f32 %v31, %v1011
    %v1028 = vsub.f32 %v32, %v1012
    %v1029 = vsub.f32 %v33, %v1013
    %v1030 = vsub.f32 %v34, %v1014
    %v1031 = vsub.f32 %v35, %v1015
    %v1032 = vsub.f32 %v36, %v1016
    %v1033 = vsub.f32 %v37, %v1017
    %v1034 = vsub.f32 %v38, %v1018
    %v1035 = vsub.f32 %v39, %v1019
    %v1036 = vsub.f32 %v40, %v1020
    %v1037 = vsub.f32 %v41, %v1021
    %v1038 = vsub.f32 %v42, %v1022
    %v1039 = vsub.f32 %v43, %v1023
    %v1040 = vsub.f32 %v44, %v1024
    %v1041 = vmul.f32 %v1025, %v1025
    %v1042 = vmul.f32 %v1026, %v1026
    %v1043 = vmul.f32 %v1027, %v1027
    %v1044 = vmul.f32 %v1028, %v1028
    %v1045 = vmul.f32 %v1029, %v1029
    %v1046 = vmul.f32 %v1030, %v1030
    %v1047 = vmul.f32 %v1031, %v1031
    %v1048 = vmul.f32 %v1032, %v1032
    %v1049 = vmul.f32 %v1033, %v1033
    %v1050 = vmul.f32 %v1034, %v1034
    %v1051 = vmul.f32 %v1035, %v1035
    %v1052 = vmul.f32 %v1036, %v1036
    %v1053 = vmul.f32 %v1037, %v1037
    %v1054 = vmul.f32 %v1038, %v1038
    %v1055 = vmul.f32 %v1039, %v1039
    %v1056 = vmul.f32 %v1040, %v1040
    %1073 = vrot.lane.b32.xlu0 %v1041, 32
    %v1074 = vpop.permute.xlu0 %1073
    %1075 = vrot.lane.b32.xlu0 %v1042, 32
    %v1076 = vpop.permute.xlu0 %1075
    %1077 = vrot.lane.b32.xlu0 %v1043, 32
    %v1078 = vpop.permute.xlu0 %1077
    %1079 = vrot.lane.b32.xlu0 %v1044, 32
    %v1080 = vpop.permute.xlu0 %1079
    %1081 = vrot.lane.b32.xlu0 %v1045, 32
    %v1082 = vpop.permute.xlu0 %1081
    %1083 = vrot.lane.b32.xlu0 %v1046, 32
    %v1084 = vpop.permute.xlu0 %1083
    %1085 = vrot.lane.b32.xlu0 %v1047, 32
    %v1086 = vpop.permute.xlu0 %1085
    %1087 = vrot.lane.b32.xlu0 %v1048, 32
    %v1088 = vpop.permute.xlu0 %1087
    %1089 = vrot.lane.b32.xlu0 %v1049, 32
    %v1090 = vpop.permute.xlu0 %1089
    %1091 = vrot.lane.b32.xlu0 %v1050, 32
    %v1092 = vpop.permute.xlu0 %1091
    %1093 = vrot.lane.b32.xlu0 %v1051, 32
    %v1094 = vpop.permute.xlu0 %1093
    %1095 = vrot.lane.b32.xlu0 %v1052, 32
    %v1096 = vpop.permute.xlu0 %1095
    %1097 = vrot.lane.b32.xlu0 %v1053, 32
    %v1098 = vpop.permute.xlu0 %1097
    %1099 = vrot.lane.b32.xlu0 %v1054, 32
    %v1100 = vpop.permute.xlu0 %1099
    %1101 = vrot.lane.b32.xlu0 %v1055, 32
    %v1102 = vpop.permute.xlu0 %1101
    %1103 = vrot.lane.b32.xlu0 %v1056, 32
    %v1104 = vpop.permute.xlu0 %1103
    %v1121 = vsel %vm47, %v1074, 0.0
    %1122 = vadd.xlane.f32.xlu0 %v1121
    %v1123 = vpop.xlane.xlu0 %1122
    %v1124 = vsel %vm47, %v1076, 0.0
    %1125 = vadd.xlane.f32.xlu0 %v1124
    %v1126 = vpop.xlane.xlu0 %1125
    %v1127 = vsel %vm47, %v1078, 0.0
    %1128 = vadd.xlane.f32.xlu0 %v1127
    %v1129 = vpop.xlane.xlu0 %1128
    %v1130 = vsel %vm47, %v1080, 0.0
    %1131 = vadd.xlane.f32.xlu0 %v1130
    %v1132 = vpop.xlane.xlu0 %1131
    %v1133 = vsel %vm47, %v1082, 0.0
    %1134 = vadd.xlane.f32.xlu0 %v1133
    %v1135 = vpop.xlane.xlu0 %1134
    %v1136 = vsel %vm47, %v1084, 0.0
    %1137 = vadd.xlane.f32.xlu0 %v1136
    %v1138 = vpop.xlane.xlu0 %1137
    %v1139 = vsel %vm47, %v1086, 0.0
    %1140 = vadd.xlane.f32.xlu0 %v1139
    %v1141 = vpop.xlane.xlu0 %1140
    %v1142 = vsel %vm47, %v1088, 0.0
    %1143 = vadd.xlane.f32.xlu0 %v1142
    %v1144 = vpop.xlane.xlu0 %1143
    %v1145 = vsel %vm47, %v1090, 0.0
    %1146 = vadd.xlane.f32.xlu0 %v1145
    %v1147 = vpop.xlane.xlu0 %1146
    %v1148 = vsel %vm47, %v1092, 0.0
    %1149 = vadd.xlane.f32.xlu0 %v1148
    %v1150 = vpop.xlane.xlu0 %1149
    %v1151 = vsel %vm47, %v1094, 0.0
    %1152 = vadd.xlane.f32.xlu0 %v1151
    %v1153 = vpop.xlane.xlu0 %1152
    %v1154 = vsel %vm47, %v1096, 0.0
    %1155 = vadd.xlane.f32.xlu0 %v1154
    %v1156 = vpop.xlane.xlu0 %1155
    %v1157 = vsel %vm47, %v1098, 0.0
    %1158 = vadd.xlane.f32.xlu0 %v1157
    %v1159 = vpop.xlane.xlu0 %1158
    %v1160 = vsel %vm47, %v1100, 0.0
    %1161 = vadd.xlane.f32.xlu0 %v1160
    %v1162 = vpop.xlane.xlu0 %1161
    %v1163 = vsel %vm47, %v1102, 0.0
    %1164 = vadd.xlane.f32.xlu0 %v1163
    %v1165 = vpop.xlane.xlu0 %1164
    %v1166 = vsel %vm47, %v1104, 0.0
    %1167 = vadd.xlane.f32.xlu0 %v1166
    %v1168 = vpop.xlane.xlu0 %1167
    %v1169 = vmul.f32 %v1123, %v96
    %v1170 = vmul.f32 %v1126, %v96
    %v1171 = vmul.f32 %v1129, %v96
    %v1172 = vmul.f32 %v1132, %v96
    %v1173 = vmul.f32 %v1135, %v96
    %v1174 = vmul.f32 %v1138, %v96
    %v1175 = vmul.f32 %v1141, %v96
    %v1176 = vmul.f32 %v1144, %v96
    %v1177 = vmul.f32 %v1147, %v96
    %v1178 = vmul.f32 %v1150, %v96
    %v1179 = vmul.f32 %v1153, %v96
    %v1180 = vmul.f32 %v1156, %v96
    %v1181 = vmul.f32 %v1159, %v96
    %v1182 = vmul.f32 %v1162, %v96
    %v1183 = vmul.f32 %v1165, %v96
    %v1184 = vmul.f32 %v1168, %v96
    %v1185 = vadd.f32 %v1169, 1e-06
    %v1186 = vadd.f32 %v1170, 1e-06
    %v1187 = vadd.f32 %v1171, 1e-06
    %v1188 = vadd.f32 %v1172, 1e-06
    %v1189 = vadd.f32 %v1173, 1e-06
    %v1190 = vadd.f32 %v1174, 1e-06
    %v1191 = vadd.f32 %v1175, 1e-06
    %v1192 = vadd.f32 %v1176, 1e-06
    %v1193 = vadd.f32 %v1177, 1e-06
    %v1194 = vadd.f32 %v1178, 1e-06
    %v1195 = vadd.f32 %v1179, 1e-06
    %v1196 = vadd.f32 %v1180, 1e-06
    %v1197 = vadd.f32 %v1181, 1e-06
    %v1198 = vadd.f32 %v1182, 1e-06
    %v1199 = vadd.f32 %v1183, 1e-06
    %v1200 = vadd.f32 %v1184, 1e-06
    %v1201 = vrsqrt.pop %v1185
    %v1202 = vrsqrt.pop %v1186
    %v1203 = vrsqrt.pop %v1187
    %v1204 = vrsqrt.pop %v1188
    %v1205 = vrsqrt.pop %v1189
    %v1206 = vrsqrt.pop %v1190
    %v1207 = vrsqrt.pop %v1191
    %v1208 = vrsqrt.pop %v1192
    %v1209 = vrsqrt.pop %v1193
    %v1210 = vrsqrt.pop %v1194
    %v1211 = vrsqrt.pop %v1195
    %v1212 = vrsqrt.pop %v1196
    %v1213 = vrsqrt.pop %v1197
    %v1214 = vrsqrt.pop %v1198
    %v1215 = vrsqrt.pop %v1199
    %v1216 = vrsqrt.pop %v1200
    %v1217 = vmul.f32 %v1025, %v1201
    %v1218 = vmul.f32 %v1026, %v1202
    %v1219 = vmul.f32 %v1027, %v1203
    %v1220 = vmul.f32 %v1028, %v1204
    %v1221 = vmul.f32 %v1029, %v1205
    %v1222 = vmul.f32 %v1030, %v1206
    %v1223 = vmul.f32 %v1031, %v1207
    %v1224 = vmul.f32 %v1032, %v1208
    %v1225 = vmul.f32 %v1033, %v1209
    %v1226 = vmul.f32 %v1034, %v1210
    %v1227 = vmul.f32 %v1035, %v1211
    %v1228 = vmul.f32 %v1036, %v1212
    %v1229 = vmul.f32 %v1037, %v1213
    %v1230 = vmul.f32 %v1038, %v1214
    %v1231 = vmul.f32 %v1039, %v1215
    %v1232 = vmul.f32 %v1040, %v1216
    %v1233 = vsel %vm47, %v241, %v577
    %v1234 = vsel %vm47, %v242, %v578
    %v1235 = vsel %vm47, %v243, %v579
    %v1236 = vsel %vm47, %v244, %v580
    %v1237 = vsel %vm47, %v245, %v581
    %v1238 = vsel %vm47, %v246, %v582
    %v1239 = vsel %vm47, %v247, %v583
    %v1240 = vsel %vm47, %v248, %v584
    %v1241 = vsel %vm47, %v249, %v585
    %v1242 = vsel %vm47, %v250, %v586
    %v1243 = vsel %vm47, %v251, %v587
    %v1244 = vsel %vm47, %v252, %v588
    %v1245 = vsel %vm47, %v253, %v589
    %v1246 = vsel %vm47, %v254, %v590
    %v1247 = vsel %vm47, %v255, %v591
    %v1248 = vsel %vm47, %v256, %v592
    %vm1249 = vcmask 523264
    %v1250 = vsel %vm1249, %v1233, %v897
    %v1251 = vsel %vm1249, %v1234, %v898
    %v1252 = vsel %vm1249, %v1235, %v899
    %v1253 = vsel %vm1249, %v1236, %v900
    %v1254 = vsel %vm1249, %v1237, %v901
    %v1255 = vsel %vm1249, %v1238, %v902
    %v1256 = vsel %vm1249, %v1239, %v903
    %v1257 = vsel %vm1249, %v1240, %v904
    %v1258 = vsel %vm1249, %v1241, %v905
    %v1259 = vsel %vm1249, %v1242, %v906
    %v1260 = vsel %vm1249, %v1243, %v907
    %v1261 = vsel %vm1249, %v1244, %v908
    %v1262 = vsel %vm1249, %v1245, %v909
    %v1263 = vsel %vm1249, %v1246, %v910
    %v1264 = vsel %vm1249, %v1247, %v911
    %v1265 = vsel %vm1249, %v1248, %v912
    %vm1266 = vcmask 785408
    %v1267 = vsel %vm1266, %v1250, %v1217
    %v1268 = vsel %vm1266, %v1251, %v1218
    %v1269 = vsel %vm1266, %v1252, %v1219
    %v1270 = vsel %vm1266, %v1253, %v1220
    %v1271 = vsel %vm1266, %v1254, %v1221
    %v1272 = vsel %vm1266, %v1255, %v1222
    %v1273 = vsel %vm1266, %v1256, %v1223
    %v1274 = vsel %vm1266, %v1257, %v1224
    %v1275 = vsel %vm1266, %v1258, %v1225
    %v1276 = vsel %vm1266, %v1259, %v1226
    %v1277 = vsel %vm1266, %v1260, %v1227
    %v1278 = vsel %vm1266, %v1261, %v1228
    %v1279 = vsel %vm1266, %v1262, %v1229
    %v1280 = vsel %vm1266, %v1263, %v1230
    %v1281 = vsel %vm1266, %v1264, %v1231
    %v1282 = vsel %vm1266, %v1265, %v1232
    %v1284 = vlaneseq
    %v1285 = vshrl.u32 %v1284, 7
    %v1286 = vsub.s32 0, %v1285
    %v1287 = vrot.slane %v45, %v1286
    %v1289 = vmul.f32 %v1267, %v1287
    %v1290 = vmul.f32 %v1268, %v1287
    %v1291 = vmul.f32 %v1269, %v1287
    %v1292 = vmul.f32 %v1270, %v1287
    %v1293 = vmul.f32 %v1271, %v1287
    %v1294 = vmul.f32 %v1272, %v1287
    %v1295 = vmul.f32 %v1273, %v1287
    %v1296 = vmul.f32 %v1274, %v1287
    %v1297 = vmul.f32 %v1275, %v1287
    %v1298 = vmul.f32 %v1276, %v1287
    %v1299 = vmul.f32 %v1277, %v1287
    %v1300 = vmul.f32 %v1278, %v1287
    %v1301 = vmul.f32 %v1279, %v1287
    %v1302 = vmul.f32 %v1280, %v1287
    %v1303 = vmul.f32 %v1281, %v1287
    %v1304 = vmul.f32 %v1282, %v1287
    %v1306 = vlaneseq
    %v1307 = vshrl.u32 %v1306, 7
    %v1308 = vsub.s32 0, %v1307
    %v1309 = vrot.slane %v46, %v1308
    %v1311 = vadd.f32 %v1289, %v1309
    %v1312 = vadd.f32 %v1290, %v1309
    %v1313 = vadd.f32 %v1291, %v1309
    %v1314 = vadd.f32 %v1292, %v1309
    %v1315 = vadd.f32 %v1293, %v1309
    %v1316 = vadd.f32 %v1294, %v1309
    %v1317 = vadd.f32 %v1295, %v1309
    %v1318 = vadd.f32 %v1296, %v1309
    %v1319 = vadd.f32 %v1297, %v1309
    %v1320 = vadd.f32 %v1298, %v1309
    %v1321 = vadd.f32 %v1299, %v1309
    %v1322 = vadd.f32 %v1300, %v1309
    %v1323 = vadd.f32 %v1301, %v1309
    %v1324 = vadd.f32 %v1302, %v1309
    %v1325 = vadd.f32 %v1303, %v1309
    %v1326 = vadd.f32 %v1304, %v1309
    %1327 = vst [vmem:[#allocation5] sm:$0xff] %v1311
    %1328 = vst [vmem:[#allocation5 + $0x8] sm:$0xff] %v1312
    %1329 = vst [vmem:[#allocation5 + $0x10] sm:$0xff] %v1313
    %1330 = vst [vmem:[#allocation5 + $0x18] sm:$0xff] %v1314
    %1331 = vst [vmem:[#allocation5 + $0x20] sm:$0xff] %v1315
    %1332 = vst [vmem:[#allocation5 + $0x28] sm:$0xff] %v1316
    %1333 = vst [vmem:[#allocation5 + $0x30] sm:$0xff] %v1317
    %1334 = vst [vmem:[#allocation5 + $0x38] sm:$0xff] %v1318
    %1335 = vst [vmem:[#allocation5 + $0x40] sm:$0xff] %v1319
    %1336 = vst [vmem:[#allocation5 + $0x48] sm:$0xff] %v1320
    %1337 = vst [vmem:[#allocation5 + $0x50] sm:$0xff] %v1321
    %1338 = vst [vmem:[#allocation5 + $0x58] sm:$0xff] %v1322
    %1339 = vst [vmem:[#allocation5 + $0x60] sm:$0xff] %v1323
    %1340 = vst [vmem:[#allocation5 + $0x68] sm:$0xff] %v1324
    %1341 = vst [vmem:[#allocation5 + $0x70] sm:$0xff] %v1325
    %1342 = vst [vmem:[#allocation5 + $0x78] sm:$0xff] %v1326
    // Predicated region
    $region18: #{tpu_custom_call.1} parent=1 // pred_check
      _
    $region19: #{tpu_custom_call.1} parent=1 // pred_check_branch
      %1344 = sbr.rel (0) target = $region21
    $region20: #{tpu_custom_call.1} parent=1 // pred_region
      %s1346 = ssub.s32 2048, 2048
      %1347 = vsyncadd [#allocation4], %s1346
      %s1348 = sshll.u32 [#allocation5], 4
      %s1349 = int_to_ptr.vmem [resolvable:$true] %s1348
      %1354 = dma.vmem_to_hbm [thread:$0]  %s1349, 2048, %s3, [#allocation4], 128, 128, 8
    $region21: #{tpu_custom_call.1} parent=1 // pred_fallthru
      _
    // Predicated region
    $region22: #{tpu_custom_call.1} parent=1 // pred_check
      _
    $region23: #{tpu_custom_call.1} parent=1 // pred_check_branch
      %1356 = sbr.rel (0) target = $region25
    $region24: #{tpu_custom_call.1} parent=1 // pred_region
      %1357 = dma.done [#allocation4], 2048
    $region25: #{tpu_custom_call.1} parent=1 // pred_fallthru
      _
    %1358 = vsyncpa [#allocation3], 1
    %1359 = vsyncpa [#allocation4], 1

</llo_original>
